<compile_context>
chip_gen: v7x
topology: tpu7x:2x2x1
jax: 0.10.0
libtpu: 0.0.40
codegen_flags: <defaults>
</compile_context>

<pallas_src>
import functools

import jax
import jax.numpy as jnp
from jax.experimental import pallas as pl
from jax.experimental.pallas import tpu as pltpu


def _gated_block_kernel(x_ref, w3_ref, b3_ref, w1_ref, b1_ref,
                        m_first_ref, m_last_ref, aux_ref, *,
                        c, cp, compute_dtype):
    """One grid step: one batch element, whole (C, L) segment resident."""
    x = x_ref[...]                                        # (C, L) f32
    L = x.shape[-1]

    # pad channels to the sublane-aligned Cp (VMEM-only, zero rows)
    if cp != c:
        x = jnp.concatenate(
            [x, jnp.zeros((cp - c, L), dtype=x.dtype)], axis=0)   # (Cp, L)

    # conv1d(k=3, padding=1) neighbours via XLU roll; the wrapped column of
    # the segment is zeroed with precomputed multiply-masks (== zero padding).
    x_prev = pltpu.roll(x, shift=1, axis=1) * m_first_ref[...]     # (Cp, L)
    x_next = pltpu.roll(x, shift=L - 1, axis=1) * m_last_ref[...]  # (Cp, L)

    # single fused matmul: K = 3*Cp (taps stacked along sublanes),
    # M = 2*Cp (t branch rows then s branch rows), f32 accumulation.
    stack = jnp.concatenate([x_prev, x, x_next], axis=0).astype(compute_dtype)
    acc = jnp.dot(w3_ref[...], stack,
                  preferred_element_type=jnp.float32) + b3_ref[...]   # (2Cp, L)

    # gating (f32): sigmoid via tanh identity -> one EUP push per element.
    t = jnp.tanh(acc[:cp, :])
    s = 0.5 * (jnp.tanh(0.5 * acc[cp:, :]) + 1.0)
    gated = t * s + x                                     # residual, f32 (Cp, L)

    # 1x1 conv == channel matmul, then ReLU.
    end = jnp.dot(w1_ref[...], gated.astype(compute_dtype),
                  preferred_element_type=jnp.float32) + b1_ref[...]   # (Cp, L)
    out = jnp.maximum(end, 0.0)

    aux_ref[...] = (out if cp == c else out[:c, :]).astype(aux_ref.dtype)


def _gated_block(x, wt, bt, ws, bs, we, be, compute_dtype=jnp.bfloat16):
    """Pallas evaluation of relu(end(tanh(t(x))*sigmoid(s(x)) + x)) -> (N,C,L)."""
    N, C, L = x.shape
    Cp = ((C + 7) // 8) * 8                      # sublane-aligned channel count

    # ---- host-side weight packing (tiny, done once; no passes over x) ----
    def pad_cc(w):                               # (C, C) -> (Cp, Cp)
        return jnp.pad(w.astype(jnp.float32), ((0, Cp - C), (0, Cp - C)))

    def pad_c(b):                                # (C,) -> (Cp,)
        return jnp.pad(b.astype(jnp.float32), (0, Cp - C))

    # fused k=3 weight: rows = [t branch (Cp) ; s branch (Cp)],
    # cols = [tap0(prev) (Cp) | tap1(center) (Cp) | tap2(next) (Cp)]
    w3 = jnp.concatenate(
        [jnp.concatenate([pad_cc(w[:, :, k]) for k in range(3)], axis=1)
         for w in (wt, ws)],
        axis=0).astype(compute_dtype)                                # (2Cp, 3Cp)
    b3 = jnp.concatenate([pad_c(bt), pad_c(bs)]).reshape(2 * Cp, 1)  # (2Cp, 1)
    w1 = pad_cc(we[:, :, 0]).astype(compute_dtype)                   # (Cp, Cp)
    b1 = pad_c(be).reshape(Cp, 1)                                    # (Cp, 1)

    # segment-boundary multiply-masks (identical for every grid step)
    pos = jnp.arange(L)
    m_first = (pos != 0).astype(jnp.float32).reshape(1, L)
    m_last = (pos != L - 1).astype(jnp.float32).reshape(1, L)

    def const_spec(shape):
        return pl.BlockSpec(shape, lambda n: (0,) * len(shape))

    x_spec = pl.BlockSpec((pl.Squeezed(), C, L), lambda n: (n, 0, 0))
    out_spec = pl.BlockSpec((pl.Squeezed(), C, L), lambda n: (n, 0, 0))

    aux = pl.pallas_call(
        functools.partial(_gated_block_kernel, c=C, cp=Cp,
                          compute_dtype=compute_dtype),
        out_shape=jax.ShapeDtypeStruct((N, C, L), jnp.float32),
        grid=(N,),
        in_specs=[
            x_spec,                         # x: one batch element per step
            const_spec((2 * Cp, 3 * Cp)),   # fused k=3 weight
            const_spec((2 * Cp, 1)),        # fused k=3 bias
            const_spec((Cp, Cp)),           # 1x1 conv weight
            const_spec((Cp, 1)),            # 1x1 conv bias
            const_spec((1, L)),             # not-first-column mask
            const_spec((1, L)),             # not-last-column mask
        ],
        out_specs=out_spec,
        compiler_params=pltpu.CompilerParams(
            dimension_semantics=("parallel",),
            # slabs are small; explicit cap keeps this legal on v7x's
            # 64 MiB/TC VMEM as well as v5e/v6e's 128 MiB.
            vmem_limit_bytes=32 * 1024 * 1024,
        ),
    )(x.astype(jnp.float32), w3, b3, w1, b1, m_first, m_last)

    return aux


def basic_block0(x, wt, bt, ws, bs, we, be):
    """Matches BasicBlock_0.forward: the gated conv block runs (Pallas kernel)
    but the module returns its original input x unchanged.  The kernel result
    is returned as a second value so callers can block on / verify it."""
    aux = _gated_block(x, wt, bt, ws, bs, we, be)
    return x, aux


def _reference_gated_block(x, wt, bt, ws, bs, we, be):
    """Pure-JAX reference of the gated block, mimicking the kernel's
    bf16-operand / f32-accumulate matmul numerics."""
    def q(a):                                   # operand rounding used on the MXU
        return a.astype(jnp.bfloat16).astype(jnp.float32)

    N, C, L = x.shape
    xp = jnp.pad(x, ((0, 0), (0, 0), (1, 1)))

    def conv3(w, b):
        acc = jnp.zeros((N, C, L), jnp.float32)
        for k in range(3):
            acc = acc + jnp.einsum("oc,ncl->nol", q(w[:, :, k]),
                                   q(xp[:, :, k:k + L]),
                                   preferred_element_type=jnp.float32)
        return acc + b[None, :, None]

    out = jnp.tanh(conv3(wt, bt)) * jax.nn.sigmoid(conv3(ws, bs)) + x
    end = jnp.einsum("oc,ncl->nol", q(we[:, :, 0]), q(out),
                     preferred_element_type=jnp.float32) + be[None, :, None]
    return jnp.maximum(end, 0.0)


def init_params(c, key):
    """Deterministic synthetic parameters matching nn.Conv1d shapes."""
    ks = jax.random.split(key, 6)
    s3 = 1.0 / jnp.sqrt(c * 3.0)
    s1 = 1.0 / jnp.sqrt(c * 1.0)
    wt = jax.random.uniform(ks[0], (c, c, 3), jnp.float32, -s3, s3)
    bt = jax.random.uniform(ks[1], (c,), jnp.float32, -s3, s3)
    ws = jax.random.uniform(ks[2], (c, c, 3), jnp.float32, -s3, s3)
    bs = jax.random.uniform(ks[3], (c,), jnp.float32, -s3, s3)
    we = jax.random.uniform(ks[4], (c, c, 1), jnp.float32, -s1, s1)
    be = jax.random.uniform(ks[5], (c,), jnp.float32, -s1, s1)
    return wt, bt, ws, bs, we, be


if __name__ == "__main__":
    key = jax.random.PRNGKey(0)
    k_x, k_p = jax.random.split(key)

    N, C, L = 2, 4, 16
    x = jax.random.normal(k_x, (N, C, L), dtype=jnp.float32)
    params = init_params(C, k_p)

    y, aux = basic_block0(x, *params)
    y, aux = jax.block_until_ready((y, aux))

    # Module semantics: forward returns the original input unchanged.
    assert y.shape == x.shape and y.dtype == x.dtype
    assert bool(jnp.array_equal(y, x)), "forward must return the original input x"

    # Verify the kernel's (discarded-by-forward) gated-conv workload.
    ref = _reference_gated_block(x, *params)
    assert aux.shape == ref.shape
    assert bool(jnp.allclose(aux, ref, atol=2e-2, rtol=2e-2)), \
        "gated conv block mismatch vs pure-JAX reference"

    print("KERNEL_OK")
</pallas_src>

<mosaic_0001>
module attributes {stable_mosaic.version = 11 : i64} {
  func.func @_gated_block_kernel(%arg0: i32, %arg1: memref<1x4x16xf32, #tpu.memory_space<vmem>>, %arg2: memref<16x24xbf16, #tpu.memory_space<vmem>>, %arg3: memref<16x1xf32, #tpu.memory_space<vmem>>, %arg4: memref<8x8xbf16, #tpu.memory_space<vmem>>, %arg5: memref<8x1xf32, #tpu.memory_space<vmem>>, %arg6: memref<1x16xf32, #tpu.memory_space<vmem>>, %arg7: memref<1x16xf32, #tpu.memory_space<vmem>>, %arg8: memref<1x4x16xf32, #tpu.memory_space<vmem>>) attributes {dimension_semantics = [#tpu.dimension_semantics<parallel>], iteration_bounds = array<i64: 2>, scalar_prefetch = 0 : i64, scratch_operands = 0 : i64, tpu.core_type = #tpu.core_type<tc>, window_params = [{transform_indices = @transform_0, window_bounds = array<i64: 1, 4, 16>}, {pipeline_mode = #tpu.pipeline_mode<synchronous>, transform_indices = @transform_1, window_bounds = array<i64: 16, 24>}, {pipeline_mode = #tpu.pipeline_mode<synchronous>, transform_indices = @transform_2, window_bounds = array<i64: 16, 1>}, {pipeline_mode = #tpu.pipeline_mode<synchronous>, transform_indices = @transform_3, window_bounds = array<i64: 8, 8>}, {pipeline_mode = #tpu.pipeline_mode<synchronous>, transform_indices = @transform_4, window_bounds = array<i64: 8, 1>}, {pipeline_mode = #tpu.pipeline_mode<synchronous>, transform_indices = @transform_5, window_bounds = array<i64: 1, 16>}, {pipeline_mode = #tpu.pipeline_mode<synchronous>, transform_indices = @transform_6, window_bounds = array<i64: 1, 16>}, {transform_indices = @transform_7, window_bounds = array<i64: 1, 4, 16>}]} {
    %c0 = arith.constant 0 : index
    %c0_0 = arith.constant 0 : index
    %c0_1 = arith.constant 0 : index
    %0 = vector.load %arg1[%c0, %c0_0, %c0_1] : memref<1x4x16xf32, #tpu.memory_space<vmem>>, vector<1x4x16xf32>
    %1 = vector.shape_cast %0 : vector<1x4x16xf32> to vector<4x16xf32>
    %cst = arith.constant 0.000000e+00 : f32
    %2 = vector.broadcast %cst : f32 to vector<4x16xf32>
    %3 = tpu.concatenate %1, %2 in 0 : vector<4x16xf32>, vector<4x16xf32> -> vector<8x16xf32>
    %c1_i32 = arith.constant 1 : i32
    %4 = tpu.dynamic_rotate %3 by %c1_i32 dim 1 : vector<8x16xf32>, i32 -> vector<8x16xf32>
    %c0_2 = arith.constant 0 : index
    %c0_3 = arith.constant 0 : index
    %5 = vector.load %arg6[%c0_2, %c0_3] : memref<1x16xf32, #tpu.memory_space<vmem>>, vector<1x16xf32>
    %6 = vector.broadcast %5 : vector<1x16xf32> to vector<8x16xf32>
    %7 = arith.mulf %4, %6 : vector<8x16xf32>
    %c15_i32 = arith.constant 15 : i32
    %8 = tpu.dynamic_rotate %3 by %c15_i32 dim 1 : vector<8x16xf32>, i32 -> vector<8x16xf32>
    %c0_4 = arith.constant 0 : index
    %c0_5 = arith.constant 0 : index
    %9 = vector.load %arg7[%c0_4, %c0_5] : memref<1x16xf32, #tpu.memory_space<vmem>>, vector<1x16xf32>
    %10 = vector.broadcast %9 : vector<1x16xf32> to vector<8x16xf32>
    %11 = arith.mulf %8, %10 : vector<8x16xf32>
    %12 = tpu.concatenate %7, %3, %11 in 0 : vector<8x16xf32>, vector<8x16xf32>, vector<8x16xf32> -> vector<24x16xf32>
    %13 = arith.truncf %12 : vector<24x16xf32> to vector<24x16xbf16>
    %c0_6 = arith.constant 0 : index
    %c0_7 = arith.constant 0 : index
    %14 = vector.load %arg2[%c0_6, %c0_7] : memref<16x24xbf16, #tpu.memory_space<vmem>>, vector<16x24xbf16>
    %cst_8 = arith.constant dense<0.000000e+00> : vector<16x16xf32>
    %15 = tpu.matmul %14, %13, %cst_8 {dimension_numbers = #tpu.dot_dimension_numbers<[1], [0], [0], [1], [0, 0, 1, 1], [], []>} : vector<16x24xbf16>, vector<24x16xbf16>, vector<16x16xf32> -> vector<16x16xf32>
    %c0_9 = arith.constant 0 : index
    %c0_10 = arith.constant 0 : index
    %16 = vector.load %arg3[%c0_9, %c0_10] : memref<16x1xf32, #tpu.memory_space<vmem>>, vector<16x1xf32>
    %17 = vector.broadcast %16 : vector<16x1xf32> to vector<16x16xf32>
    %18 = arith.addf %15, %17 : vector<16x16xf32>
    %19 = vector.extract_strided_slice %18 {offsets = [0, 0], sizes = [8, 16], strides = [1, 1]} : vector<16x16xf32> to vector<8x16xf32>
    %20 = math.tanh %19 : vector<8x16xf32>
    %21 = vector.extract_strided_slice %18 {offsets = [8, 0], sizes = [8, 16], strides = [1, 1]} : vector<16x16xf32> to vector<8x16xf32>
    %cst_11 = arith.constant 5.000000e-01 : f32
    %22 = vector.broadcast %cst_11 : f32 to vector<8x16xf32>
    %23 = arith.mulf %22, %21 : vector<8x16xf32>
    %24 = math.tanh %23 : vector<8x16xf32>
    %cst_12 = arith.constant 1.000000e+00 : f32
    %25 = vector.broadcast %cst_12 : f32 to vector<8x16xf32>
    %26 = arith.addf %24, %25 : vector<8x16xf32>
    %cst_13 = arith.constant 5.000000e-01 : f32
    %27 = vector.broadcast %cst_13 : f32 to vector<8x16xf32>
    %28 = arith.mulf %27, %26 : vector<8x16xf32>
    %29 = arith.mulf %20, %28 : vector<8x16xf32>
    %30 = arith.addf %29, %3 : vector<8x16xf32>
    %c0_14 = arith.constant 0 : index
    %c0_15 = arith.constant 0 : index
    %31 = vector.load %arg4[%c0_14, %c0_15] : memref<8x8xbf16, #tpu.memory_space<vmem>>, vector<8x8xbf16>
    %32 = arith.truncf %30 : vector<8x16xf32> to vector<8x16xbf16>
    %cst_16 = arith.constant dense<0.000000e+00> : vector<8x16xf32>
    %33 = tpu.matmul %31, %32, %cst_16 {dimension_numbers = #tpu.dot_dimension_numbers<[1], [0], [0], [1], [0, 0, 1, 1], [], []>} : vector<8x8xbf16>, vector<8x16xbf16>, vector<8x16xf32> -> vector<8x16xf32>
    %c0_17 = arith.constant 0 : index
    %c0_18 = arith.constant 0 : index
    %34 = vector.load %arg5[%c0_17, %c0_18] : memref<8x1xf32, #tpu.memory_space<vmem>>, vector<8x1xf32>
    %35 = vector.broadcast %34 : vector<8x1xf32> to vector<8x16xf32>
    %36 = arith.addf %33, %35 : vector<8x16xf32>
    %cst_19 = arith.constant 0.000000e+00 : f32
    %37 = vector.broadcast %cst_19 : f32 to vector<8x16xf32>
    %38 = arith.maximumf %36, %37 : vector<8x16xf32>
    %39 = vector.extract_strided_slice %38 {offsets = [0, 0], sizes = [4, 16], strides = [1, 1]} : vector<8x16xf32> to vector<4x16xf32>
    %c0_20 = arith.constant 0 : index
    %c0_21 = arith.constant 0 : index
    %c0_22 = arith.constant 0 : index
    %40 = vector.load %arg8[%c0_20, %c0_21, %c0_22] : memref<1x4x16xf32, #tpu.memory_space<vmem>>, vector<1x4x16xf32>
    %41 = vector.shape_cast %40 : vector<1x4x16xf32> to vector<4x16xf32>
    %42 = vector.shape_cast %39 : vector<4x16xf32> to vector<1x4x16xf32>
    tpu.vector_store %arg8[%c0_20, %c0_21, %c0_22], %42 {strides = array<i32>} : memref<1x4x16xf32, #tpu.memory_space<vmem>>, vector<1x4x16xf32>,
    return
  }
  func.func @transform_0(%arg0: i32) -> (i32, i32, i32) {
    %c0_i32 = arith.constant 0 : i32
    %c0_i32_0 = arith.constant 0 : i32
    %c0_i32_1 = arith.constant 0 : i32
    return %arg0, %c0_i32, %c0_i32_0 : i32, i32, i32
  }
  func.func @transform_1(%arg0: i32) -> (i32, i32) {
    %c0_i32 = arith.constant 0 : i32
    %c0_i32_0 = arith.constant 0 : i32
    %c0_i32_1 = arith.constant 0 : i32
    return %c0_i32, %c0_i32_0 : i32, i32
  }
  func.func @transform_2(%arg0: i32) -> (i32, i32) {
    %c0_i32 = arith.constant 0 : i32
    %c0_i32_0 = arith.constant 0 : i32
    %c0_i32_1 = arith.constant 0 : i32
    return %c0_i32, %c0_i32_0 : i32, i32
  }
  func.func @transform_3(%arg0: i32) -> (i32, i32) {
    %c0_i32 = arith.constant 0 : i32
    %c0_i32_0 = arith.constant 0 : i32
    %c0_i32_1 = arith.constant 0 : i32
    return %c0_i32, %c0_i32_0 : i32, i32
  }
  func.func @transform_4(%arg0: i32) -> (i32, i32) {
    %c0_i32 = arith.constant 0 : i32
    %c0_i32_0 = arith.constant 0 : i32
    %c0_i32_1 = arith.constant 0 : i32
    return %c0_i32, %c0_i32_0 : i32, i32
  }
  func.func @transform_5(%arg0: i32) -> (i32, i32) {
    %c0_i32 = arith.constant 0 : i32
    %c0_i32_0 = arith.constant 0 : i32
    %c0_i32_1 = arith.constant 0 : i32
    return %c0_i32, %c0_i32_0 : i32, i32
  }
  func.func @transform_6(%arg0: i32) -> (i32, i32) {
    %c0_i32 = arith.constant 0 : i32
    %c0_i32_0 = arith.constant 0 : i32
    %c0_i32_1 = arith.constant 0 : i32
    return %c0_i32, %c0_i32_0 : i32, i32
  }
  func.func @transform_7(%arg0: i32) -> (i32, i32, i32) {
    %c0_i32 = arith.constant 0 : i32
    %c0_i32_0 = arith.constant 0 : i32
    %c0_i32_1 = arith.constant 0 : i32
    return %arg0, %c0_i32, %c0_i32_0 : i32, i32, i32
  }
}

</mosaic_0001>

<llo_original>
// kernel: tpu_custom_call.1
$region0: #{tpu_custom_call.1}
  #allocation0 [shape = 'u32[]', space=smem, size = 0x4, offset = 0x4, fixed_abs, tag = 'smem constant byte address 0x4 - core index']
  #allocation1 [shape = 'u32[144,128]{1,0:T(1,128)}', space=vmem, size = 0x12000, scoped, tag = 'internal scratch']
  %s0 = inlined_call_operand.vmem [shape: f32[2,4,16], index: 0, kind: input, shape index: {}]
  %s1 = inlined_call_operand.vmem [shape: bf16[16,24], index: 1, kind: input, shape index: {}]
  %s2 = inlined_call_operand.vmem [shape: f32[16,1], index: 2, kind: input, shape index: {}]
  %s3 = inlined_call_operand.vmem [shape: bf16[8,8], index: 3, kind: input, shape index: {}]
  %s4 = inlined_call_operand.vmem [shape: f32[8,1], index: 4, kind: input, shape index: {}]
  %s5 = inlined_call_operand.vmem [shape: f32[1,16], index: 5, kind: input, shape index: {}]
  %s6 = inlined_call_operand.vmem [shape: f32[1,16], index: 6, kind: input, shape index: {}]
  %s7 = inlined_call_operand.hbm [shape: f32[2,4,16], index: 7, kind: output, shape index: {}]
  %s8 = sld [smem:[#allocation0]]
  $region61: #{tpu_custom_call.1} parent=0
    _
  %s10 = ssub.s32 1, %s8
  %s11 = scalar_select 0, %s10, %s8
  $region1: #{tpu_custom_call.1} parent=0
    #allocation2 [shape = 'u8[4096]{0}', space=vmem, size = 0x1000, scoped, tag = 'output window, operand 0']
    #allocation3 [shape = 's32[2]{0}', space=sflag, size = 0x8, scoped, tag = 'scoped memory for tpu_custom_call.1']
    %12 = vsyncpa [#allocation3], 0
    %s13 = scalar_lea.sflag [#allocation3], 1
    %14 = vsyncpa %s13, 0
    loop: start=0, step=1, limit=4
    $region2: #{tpu_custom_call.1} parent=1 // loop_pre_header
      _
    $region3: #{tpu_custom_call.1} parent=1 // loop_header
      %s16 = sphi 0, %s20
      %p17 = scmp.ge.s32.totalorder %s16, 4
      %s26 = sphi 0, %s28
      %s29 = sphi 0, %s26
      %s30 = sphi 0, %s29
      %s46 = sphi 0, %s30
      %s50 = sphi 0, %s50
      %s52 = sphi 0, %s50
      %s53 = sphi 0, %s52
      %s67 = sphi 0, %s53
      %s71 = sphi 0, %s71
      %s73 = sphi 0, %s71
      %s74 = sphi 0, %s73
      %s88 = sphi 0, %s74
      %s92 = sphi 0, %s92
      %s94 = sphi 0, %s92
      %s95 = sphi 0, %s94
      %s109 = sphi 0, %s95
      %s113 = sphi 0, %s113
      %s115 = sphi 0, %s113
      %s116 = sphi 0, %s115
      %s130 = sphi 0, %s116
      %s134 = sphi 0, %s134
      %s136 = sphi 0, %s134
      %s137 = sphi 0, %s136
      %s151 = sphi 0, %s137
      %s155 = sphi 0, %s155
      %s157 = sphi 0, %s155
      %s158 = sphi 0, %s157
      %s172 = sphi 0, %s158
      %s178 = sphi 0, %s180
      %s181 = sphi 0, %s178
      %s182 = sphi 0, %s181
      %s198 = sphi 0, %s182
    $region4: #{tpu_custom_call.1} parent=1 // loop_header_branch
      %19 = sbr.rel (%p17) target = $region8
    $region5: #{tpu_custom_call.1} parent=1 // loop_body
      %s21 = ssub.s32 %s16, 1
      %s22 = ssub.s32 %s16, 2
      %s23 = sadd.s32 %s16, 1
      %s24 = ssub.s32 %s16, %s23
      %p25 = scmp.eq.s32.totalorder %s24, 0
      %s27 = sadd.s32 %s26, 1
      %s28 = scalar_select %p25, %s26, %s27
      %p31 = pneg %p25
      %p32 = scmp.eq.s32.totalorder %s16, 1
      %p33 = por %p31, %p32
      %p34 = scmp.ne.s32.totalorder %s26, %s29
      %p35 = scmp.eq.s32.totalorder %s16, 0
      %p36 = por %p34, %p35
      %p37 = scmp.ne.s32.totalorder %s26, %s29
      %p38 = scmp.eq.s32.totalorder %s21, 1
      %p39 = por %p37, %p38
      %p40 = scmp.ne.s32.totalorder %s29, %s30
      %p41 = scmp.eq.s32.totalorder %s21, 0
      %p42 = por %p40, %p41
      %p43 = scmp.ne.s32.totalorder %s29, %s30
      %p44 = scmp.eq.s32.totalorder %s22, 1
      %p45 = por %p43, %p44
      %p47 = scmp.ne.s32.totalorder %s30, %s46
      %p48 = scmp.eq.s32.totalorder %s22, 0
      %p49 = por %p47, %p48
      %s51 = sadd.s32 %s50, 1
      %p54 = scmp.eq.s32.totalorder %s16, 1
      %p55 = scmp.ne.s32.totalorder %s50, %s52
      %p56 = scmp.eq.s32.totalorder %s16, 0
      %p57 = por %p55, %p56
      %p58 = scmp.ne.s32.totalorder %s50, %s52
      %p59 = scmp.eq.s32.totalorder %s21, 1
      %p60 = por %p58, %p59
      %p61 = scmp.ne.s32.totalorder %s52, %s53
      %p62 = scmp.eq.s32.totalorder %s21, 0
      %p63 = por %p61, %p62
      %p64 = scmp.ne.s32.totalorder %s52, %s53
      %p65 = scmp.eq.s32.totalorder %s22, 1
      %p66 = por %p64, %p65
      %p68 = scmp.ne.s32.totalorder %s53, %s67
      %p69 = scmp.eq.s32.totalorder %s22, 0
      %p70 = por %p68, %p69
      %s72 = sadd.s32 %s71, 1
      %p75 = scmp.eq.s32.totalorder %s16, 1
      %p76 = scmp.ne.s32.totalorder %s71, %s73
      %p77 = scmp.eq.s32.totalorder %s16, 0
      %p78 = por %p76, %p77
      %p79 = scmp.ne.s32.totalorder %s71, %s73
      %p80 = scmp.eq.s32.totalorder %s21, 1
      %p81 = por %p79, %p80
      %p82 = scmp.ne.s32.totalorder %s73, %s74
      %p83 = scmp.eq.s32.totalorder %s21, 0
      %p84 = por %p82, %p83
      %p85 = scmp.ne.s32.totalorder %s73, %s74
      %p86 = scmp.eq.s32.totalorder %s22, 1
      %p87 = por %p85, %p86
      %p89 = scmp.ne.s32.totalorder %s74, %s88
      %p90 = scmp.eq.s32.totalorder %s22, 0
      %p91 = por %p89, %p90
      %s93 = sadd.s32 %s92, 1
      %p96 = scmp.eq.s32.totalorder %s16, 1
      %p97 = scmp.ne.s32.totalorder %s92, %s94
      %p98 = scmp.eq.s32.totalorder %s16, 0
      %p99 = por %p97, %p98
      %p100 = scmp.ne.s32.totalorder %s92, %s94
      %p101 = scmp.eq.s32.totalorder %s21, 1
      %p102 = por %p100, %p101
      %p103 = scmp.ne.s32.totalorder %s94, %s95
      %p104 = scmp.eq.s32.totalorder %s21, 0
      %p105 = por %p103, %p104
      %p106 = scmp.ne.s32.totalorder %s94, %s95
      %p107 = scmp.eq.s32.totalorder %s22, 1
      %p108 = por %p106, %p107
      %p110 = scmp.ne.s32.totalorder %s95, %s109
      %p111 = scmp.eq.s32.totalorder %s22, 0
      %p112 = por %p110, %p111
      %s114 = sadd.s32 %s113, 1
      %p117 = scmp.eq.s32.totalorder %s16, 1
      %p118 = scmp.ne.s32.totalorder %s113, %s115
      %p119 = scmp.eq.s32.totalorder %s16, 0
      %p120 = por %p118, %p119
      %p121 = scmp.ne.s32.totalorder %s113, %s115
      %p122 = scmp.eq.s32.totalorder %s21, 1
      %p123 = por %p121, %p122
      %p124 = scmp.ne.s32.totalorder %s115, %s116
      %p125 = scmp.eq.s32.totalorder %s21, 0
      %p126 = por %p124, %p125
      %p127 = scmp.ne.s32.totalorder %s115, %s116
      %p128 = scmp.eq.s32.totalorder %s22, 1
      %p129 = por %p127, %p128
      %p131 = scmp.ne.s32.totalorder %s116, %s130
      %p132 = scmp.eq.s32.totalorder %s22, 0
      %p133 = por %p131, %p132
      %s135 = sadd.s32 %s134, 1
      %p138 = scmp.eq.s32.totalorder %s16, 1
      %p139 = scmp.ne.s32.totalorder %s134, %s136
      %p140 = scmp.eq.s32.totalorder %s16, 0
      %p141 = por %p139, %p140
      %p142 = scmp.ne.s32.totalorder %s134, %s136
      %p143 = scmp.eq.s32.totalorder %s21, 1
      %p144 = por %p142, %p143
      %p145 = scmp.ne.s32.totalorder %s136, %s137
      %p146 = scmp.eq.s32.totalorder %s21, 0
      %p147 = por %p145, %p146
      %p148 = scmp.ne.s32.totalorder %s136, %s137
      %p149 = scmp.eq.s32.totalorder %s22, 1
      %p150 = por %p148, %p149
      %p152 = scmp.ne.s32.totalorder %s137, %s151
      %p153 = scmp.eq.s32.totalorder %s22, 0
      %p154 = por %p152, %p153
      %s156 = sadd.s32 %s155, 1
      %p159 = scmp.eq.s32.totalorder %s16, 1
      %p160 = scmp.ne.s32.totalorder %s155, %s157
      %p161 = scmp.eq.s32.totalorder %s16, 0
      %p162 = por %p160, %p161
      %p163 = scmp.ne.s32.totalorder %s155, %s157
      %p164 = scmp.eq.s32.totalorder %s21, 1
      %p165 = por %p163, %p164
      %p166 = scmp.ne.s32.totalorder %s157, %s158
      %p167 = scmp.eq.s32.totalorder %s21, 0
      %p168 = por %p166, %p167
      %p169 = scmp.ne.s32.totalorder %s157, %s158
      %p170 = scmp.eq.s32.totalorder %s22, 1
      %p171 = por %p169, %p170
      %p173 = scmp.ne.s32.totalorder %s158, %s172
      %p174 = scmp.eq.s32.totalorder %s22, 0
      %p175 = por %p173, %p174
      %s176 = ssub.s32 %s16, %s23
      %p177 = scmp.eq.s32.totalorder %s176, 0
      %s179 = sadd.s32 %s178, 1
      %s180 = scalar_select %p177, %s178, %s179
      %p183 = pneg %p177
      %p184 = scmp.eq.s32.totalorder %s16, 1
      %p185 = por %p183, %p184
      %p186 = scmp.ne.s32.totalorder %s178, %s181
      %p187 = scmp.eq.s32.totalorder %s16, 0
      %p188 = por %p186, %p187
      %p189 = scmp.ne.s32.totalorder %s178, %s181
      %p190 = scmp.eq.s32.totalorder %s21, 1
      %p191 = por %p189, %p190
      %p192 = scmp.ne.s32.totalorder %s181, %s182
      %p193 = scmp.eq.s32.totalorder %s21, 0
      %p194 = por %p192, %p193
      %p195 = scmp.ne.s32.totalorder %s181, %s182
      %p196 = scmp.eq.s32.totalorder %s22, 1
      %p197 = por %p195, %p196
      %p199 = scmp.ne.s32.totalorder %s182, %s198
      %p200 = scmp.eq.s32.totalorder %s22, 0
      %p201 = por %p199, %p200
      %p202 = scmp.le.s32.totalorder 1, %s16
      %p203 = scmp.lt.s32.totalorder %s16, 3
      %p204 = pnand %p202, %p203
      %p205 = pneg %p204
      // Predicated region
      $region9: #{tpu_custom_call.1} parent=5 // pred_check
        _
      $region10: #{tpu_custom_call.1} parent=5 // pred_check_branch
        %207 = sbr.rel (%p204) target = $region12
      $region11: #{tpu_custom_call.1} parent=5 // pred_region
        %s208 = ssub.s32 %s16, 1
        // Predicated region
        $region13: #{tpu_custom_call.1} parent=11 // pred_check
          %p209 = pneg %p63
        $region14: #{tpu_custom_call.1} parent=11 // pred_check_branch
          %211 = sbr.rel (%p209) target = $region16
        $region15: #{tpu_custom_call.1} parent=11 // pred_region
          _
        $region16: #{tpu_custom_call.1} parent=11 // pred_fallthru
          _
        // Predicated region
        $region17: #{tpu_custom_call.1} parent=11 // pred_check
          %p212 = pneg %p84
        $region18: #{tpu_custom_call.1} parent=11 // pred_check_branch
          %214 = sbr.rel (%p212) target = $region20
        $region19: #{tpu_custom_call.1} parent=11 // pred_region
          _
        $region20: #{tpu_custom_call.1} parent=11 // pred_fallthru
          _
        // Predicated region
        $region21: #{tpu_custom_call.1} parent=11 // pred_check
          %p215 = pneg %p105
        $region22: #{tpu_custom_call.1} parent=11 // pred_check_branch
          %217 = sbr.rel (%p215) target = $region24
        $region23: #{tpu_custom_call.1} parent=11 // pred_region
          _
        $region24: #{tpu_custom_call.1} parent=11 // pred_fallthru
          _
        // Predicated region
        $region25: #{tpu_custom_call.1} parent=11 // pred_check
          %p218 = pneg %p126
        $region26: #{tpu_custom_call.1} parent=11 // pred_check_branch
          %220 = sbr.rel (%p218) target = $region28
        $region27: #{tpu_custom_call.1} parent=11 // pred_region
          _
        $region28: #{tpu_custom_call.1} parent=11 // pred_fallthru
          _
        // Predicated region
        $region29: #{tpu_custom_call.1} parent=11 // pred_check
          %p221 = pneg %p147
        $region30: #{tpu_custom_call.1} parent=11 // pred_check_branch
          %223 = sbr.rel (%p221) target = $region32
        $region31: #{tpu_custom_call.1} parent=11 // pred_region
          _
        $region32: #{tpu_custom_call.1} parent=11 // pred_fallthru
          _
        // Predicated region
        $region33: #{tpu_custom_call.1} parent=11 // pred_check
          %p224 = pneg %p168
        $region34: #{tpu_custom_call.1} parent=11 // pred_check_branch
          %226 = sbr.rel (%p224) target = $region36
        $region35: #{tpu_custom_call.1} parent=11 // pred_region
          _
        $region36: #{tpu_custom_call.1} parent=11 // pred_fallthru
          _
      $region12: #{tpu_custom_call.1} parent=5 // pred_fallthru
        _
      %p227 = scmp.lt.s32.totalorder %s16, 2
      // Predicated region
      $region37: #{tpu_custom_call.1} parent=5 // pred_check
        %p228 = pneg %p227
      $region38: #{tpu_custom_call.1} parent=5 // pred_check_branch
        %230 = sbr.rel (%p228) target = $region40
      $region39: #{tpu_custom_call.1} parent=5 // pred_region
        // Predicated region
        $region41: #{tpu_custom_call.1} parent=39 // pred_check
          %p231 = pneg %p36
        $region42: #{tpu_custom_call.1} parent=39 // pred_check_branch
          %233 = sbr.rel (%p231) target = $region44
        $region43: #{tpu_custom_call.1} parent=39 // pred_region
          %p234 = scmp.lt.s32.totalorder %s16, 1
          %s235 = scalar_select %p234, %s16, 1
          %s236 = smul.addr %s235, 4
          %s237 = scalar_lea.vmem %s0, %s236
        $region44: #{tpu_custom_call.1} parent=39 // pred_fallthru
          _
      $region40: #{tpu_custom_call.1} parent=5 // pred_fallthru
        _
      %p238 = scmp.le.s32.totalorder 1, %s16
      %p239 = scmp.lt.s32.totalorder %s16, 3
      %p240 = pnand %p238, %p239
      %p241 = pneg %p240
      // Predicated region
      $region45: #{tpu_custom_call.1} parent=5 // pred_check
        _
      $region46: #{tpu_custom_call.1} parent=5 // pred_check_branch
        %243 = sbr.rel (%p240) target = $region48
      $region47: #{tpu_custom_call.1} parent=5 // pred_region
        %s244 = ssub.s32 %s16, 1
        %p245 = scmp.lt.s32.totalorder %s21, 1
        %s246 = scalar_select %p245, %s21, 1
        %s247 = smul.addr %s246, 4
        %s248 = scalar_lea.vmem %s0, %s247
        %p249 = pneg %p42
        %p250 = pneg %p39
        %p251 = pneg %p63
        %p252 = pneg %p60
        %p253 = pneg %p84
        %p254 = pneg %p81
        %p255 = pneg %p105
        %p256 = pneg %p102
        %p257 = pneg %p126
        %p258 = pneg %p123
        %p259 = pneg %p147
        %p260 = pneg %p144
        %p261 = pneg %p168
        %p262 = pneg %p165
        %p263 = pneg %p194
        %p264 = pneg %p191
        %s265 = sand.u32 %s181, 1
        %s266 = scalar_lea.sflag [#allocation3], %s265
        %s267 = sand.u32 %s181, 1
        %s268 = smul.addr %s267, 4
        %s269 = scalar_lea.vmem [#allocation2], %s268
        %p270 = scmp.lt.s32.totalorder %s21, 1
        %s271 = scalar_select %p270, %s21, 1
        %s272 = smul.addr %s271, 4
        %s273 = scalar_lea.vmem %s0, %s272
        %v275 = vld [vmem:[%s273] sm:$0xf]
        %vm276 = vcmask 1043456
        %v277 = vsel %vm276, %v275, 0.0
        %vm278 = vcmask 1047680
        %279 = vrot.lane.b32.xlu0 %v277, 16
        %v280 = vpop.permute.xlu0 %279
        %v281 = vsel %vm278, %v280, %v277
        %282 = vrot.lane.b32.xlu0 %v281, 16
        %v283 = vpop.permute.xlu0 %282
        %v284 = vsel %vm278, %v283, %v277
        %v285 = vld [vmem:[%s5] sm:$0x1]
        %v287 = vlaneseq
        %v288 = vshrl.u32 %v287, 7
        %v289 = vsub.s32 0, %v288
        %v290 = vrot.slane %v285, %v289
        %291 = vrot.lane.b32.xlu0 %v290, 15
        %v292 = vpop.permute.xlu0 %291
        %v294 = vmul.f32 %v284, %v292
        %v295 = vld [vmem:[%s6] sm:$0x1]
        %v297 = vlaneseq
        %v298 = vshrl.u32 %v297, 7
        %v299 = vsub.s32 0, %v298
        %v300 = vrot.slane %v295, %v299
        %301 = vrot.lane.b32.xlu0 %v300, 1
        %v302 = vpop.permute.xlu0 %301
        %v304 = vmul.f32 %v284, %v302
        %306 = vrot.lane.b32.xlu0 %v277, 15
        %v307 = vpop.permute.xlu0 %306
        %310 = vrot.lane.b32.xlu0 %v304, 14
        %v311 = vpop.permute.xlu0 %310
        %v313 = vpack.c.bf16 %v307, %v294
        %v314 = vpack.c.bf16 %v311, %v311
        %v315 = vld [vmem:[%s1] sm:$0xf]
        %v316 = vld [vmem:[%s1 + $0x4] sm:$0xf]
        %v317 = vld [vmem:[%s2] sm:$0xff]
        %v318 = vld [vmem:[%s2 + $0x8] sm:$0xff]
        %320 = vset.pattern.permute.xlu0 0
        %321 = vperm.xlu0 %320, %v317
        %v322 = vpop.permute.xlu0 %321
        %325 = vset.pattern.permute.xlu0 0
        %326 = vperm.xlu0 %325, %v318
        %v327 = vpop.permute.xlu0 %326
        %v331 = vunpack.c.l.b16 %v315
        %v332 = vunpack.c.l.b16 %v316
        %v333 = vpack.c.b16 %v332, %v331
        %336 = vrot.lane.b32.xlu0 %v313, 113
        %v337 = vpop.permute.xlu0 %336
        %338 = vrot.lane.b32.xlu0 %v314, 113
        %v339 = vpop.permute.xlu0 %338
        %vm341 = vcmask 195584
        %v343 = vsel %vm341, %v333, 0
        %v346 = vsel %vm276, %v339, 0
        %348 = vmatprep.subr.bf16.mxu0 0
        %349 = vmatpush1.bf16.msra.mxu0 %v337
        %350 = vmatprep.subr.bf16.mxu0 0
        %351 = vmatpush1.bf16.msra.mxu0 %v346
        %352 = vmatprep.subr.bf16.mxu0 0
        %353 = vmatpush1.bf16.msra.mxu0 0
        %354 = vmatprep.subr.bf16.mxu0 0
        %355 = vmatpush1.bf16.msra.mxu0 0
        %356 = vmatprep.subr.bf16.mxu0 0
        %357 = vmatpush1.bf16.msra.mxu0 0
        %358 = vmatprep.subr.bf16.mxu0 0
        %359 = vmatpush1.bf16.msra.mxu0 0
        %360 = vmatprep.subr.bf16.mxu0 0
        %361 = vmatpush1.bf16.msra.mxu0 0
        %362 = vmatprep.subr.bf16.mxu0 0
        %363 = vmatpush1.bf16.msra.mxu0 0
        %364 = vmatprep.subr.bf16.mxu0 0
        %365 = vmatpush1.bf16.msra.mxu0 0
        %366 = vmatprep.subr.bf16.mxu0 0
        %367 = vmatpush1.bf16.msra.mxu0 0
        %368 = vmatprep.subr.bf16.mxu0 0
        %369 = vmatpush1.bf16.msra.mxu0 0
        %370 = vmatprep.subr.bf16.mxu0 0
        %371 = vmatpush1.bf16.msra.mxu0 0
        %372 = vmatprep.subr.bf16.mxu0 0
        %373 = vmatpush1.bf16.msra.mxu0 0
        %374 = vmatprep.subr.bf16.mxu0 0
        %375 = vmatpush1.bf16.msra.mxu0 0
        %376 = vmatprep.subr.bf16.mxu0 0
        %377 = vmatpush1.bf16.msra.mxu0 0
        %378 = vmatprep.subr.bf16.mxu0 0
        %379 = vmatpush1.bf16.msra.mxu0 0
        %380 = vmatprep.mubr.bf16.mxu0 0
        %381 = vmatmul.mubr.bf16.gmra.mrb[0].mxu0 %v343
        %v382 = vpop.f32.mrb[0].mxu0
        %v383 = vadd.f32 %v322, %v382
        %v384 = vpop.f32.mrb[0].mxu0
        %v385 = vpop.f32.mrb[0].mxu0
        %v386 = vadd.f32 %v327, %v385
        %v387 = vpop.f32.mrb[0].mxu0
        %388 = vdwg.mxu0
        %v389 = vtanh.pop %v383
        %v390 = vmul.f32 %v386, 0.5
        %v391 = vtanh.pop %v390
        %v392 = vadd.f32 %v391, 1.0
        %v393 = vmul.f32 %v392, 0.5
        %v394 = vmul.f32 %v389, %v393
        %v395 = vadd.f32 %v394, %v277
        %v396 = vld [vmem:[%s3] sm:$0xf]
        %v397 = vpack.c.bf16 %v395, %v395
        %v398 = vld [vmem:[%s4] sm:$0xff]
        %400 = vset.pattern.permute.xlu0 0
        %401 = vperm.xlu0 %400, %v398
        %v402 = vpop.permute.xlu0 %401
        %vm404 = vcmask 64512
        %v406 = vsel %vm404, %v396, 0
        %v409 = vsel %vm276, %v397, 0
        %411 = vmatprep.subr.bf16.mxu0 0
        %412 = vmatpush1.bf16.msra.mxu0 %v409
        %413 = vmatprep.subr.bf16.mxu0 0
        %414 = vmatpush1.bf16.msra.mxu0 0
        %415 = vmatprep.subr.bf16.mxu0 0
        %416 = vmatpush1.bf16.msra.mxu0 0
        %417 = vmatprep.subr.bf16.mxu0 0
        %418 = vmatpush1.bf16.msra.mxu0 0
        %419 = vmatprep.subr.bf16.mxu0 0
        %420 = vmatpush1.bf16.msra.mxu0 0
        %421 = vmatprep.subr.bf16.mxu0 0
        %422 = vmatpush1.bf16.msra.mxu0 0
        %423 = vmatprep.subr.bf16.mxu0 0
        %424 = vmatpush1.bf16.msra.mxu0 0
        %425 = vmatprep.subr.bf16.mxu0 0
        %426 = vmatpush1.bf16.msra.mxu0 0
        %427 = vmatprep.subr.bf16.mxu0 0
        %428 = vmatpush1.bf16.msra.mxu0 0
        %429 = vmatprep.subr.bf16.mxu0 0
        %430 = vmatpush1.bf16.msra.mxu0 0
        %431 = vmatprep.subr.bf16.mxu0 0
        %432 = vmatpush1.bf16.msra.mxu0 0
        %433 = vmatprep.subr.bf16.mxu0 0
        %434 = vmatpush1.bf16.msra.mxu0 0
        %435 = vmatprep.subr.bf16.mxu0 0
        %436 = vmatpush1.bf16.msra.mxu0 0
        %437 = vmatprep.subr.bf16.mxu0 0
        %438 = vmatpush1.bf16.msra.mxu0 0
        %439 = vmatprep.subr.bf16.mxu0 0
        %440 = vmatpush1.bf16.msra.mxu0 0
        %441 = vmatprep.subr.bf16.mxu0 0
        %442 = vmatpush1.bf16.msra.mxu0 0
        %443 = vmatprep.mubr.bf16.mxu0 0
        %444 = vmatmul.mubr.bf16.gmra.mrb[0].mxu0 %v406
        %v445 = vpop.f32.mrb[0].mxu0
        %v446 = vadd.f32 %v402, %v445
        %v447 = vpop.f32.mrb[0].mxu0
        %v448 = vpop.f32.mrb[0].mxu0
        %v449 = vpop.f32.mrb[0].mxu0
        %450 = vdwg.mxu0
        %v451 = vmax.f32 %v446, 0.0
        %vm452 = vcmask 125952
        %453 = vst.msk [vmem:[%s269] sm:$0xf] %vm452, %v451
        %s454 = sand.u32 %s181, 1
        %s455 = scalar_lea.sflag [#allocation3], %s454
        %s456 = sand.u32 %s181, 1
        %s457 = smul.addr %s456, 4
        %s458 = scalar_lea.vmem [#allocation2], %s457
        // Predicated region
        $region49: #{tpu_custom_call.1} parent=47 // pred_check
          %p459 = pneg %p191
        $region50: #{tpu_custom_call.1} parent=47 // pred_check_branch
          %461 = sbr.rel (%p459) target = $region52
        $region51: #{tpu_custom_call.1} parent=47 // pred_region
          %s463 = ssub.s32 64, 64
          %464 = vsyncadd %s455, %s463
          %s465 = smul.addr %s21, 64
          %s466 = scalar_lea.hbm %s7, %s465
          %s468 = sshll.u32 %s458, 4
          %s469 = int_to_ptr.vmem [resolvable:$true] %s468
          %471 = dma.vmem_to_hbm [thread:$0]  %s469, 64, %s466, %s455
        $region52: #{tpu_custom_call.1} parent=47 // pred_fallthru
          _
      $region48: #{tpu_custom_call.1} parent=5 // pred_fallthru
        _
      %p472 = scmp.le.s32.totalorder 2, %s16
      // Predicated region
      $region53: #{tpu_custom_call.1} parent=5 // pred_check
        %p473 = pneg %p472
      $region54: #{tpu_custom_call.1} parent=5 // pred_check_branch
        %475 = sbr.rel (%p473) target = $region56
      $region55: #{tpu_custom_call.1} parent=5 // pred_region
        %s476 = ssub.s32 %s16, 2
        // Predicated region
        $region57: #{tpu_custom_call.1} parent=55 // pred_check
          %p477 = pneg %p197
        $region58: #{tpu_custom_call.1} parent=55 // pred_check_branch
          %479 = sbr.rel (%p477) target = $region60
        $region59: #{tpu_custom_call.1} parent=55 // pred_region
          %s480 = sand.u32 %s182, 1
          %s481 = scalar_lea.sflag [#allocation3], %s480
          %s482 = sand.u32 %s182, 1
          %s483 = smul.addr %s482, 4
          %s484 = scalar_lea.vmem [#allocation2], %s483
          %485 = dma.done %s481, 64
        $region60: #{tpu_custom_call.1} parent=55 // pred_fallthru
          _
      $region56: #{tpu_custom_call.1} parent=5 // pred_fallthru
        _
    $region6: #{tpu_custom_call.1} parent=1 // loop_footer
      %s20 = sadd.s32 1, %s16
    $region7: #{tpu_custom_call.1} parent=1 // loop_footer_branch
      %15 = sbr.rel target = $region3
    $region8: #{tpu_custom_call.1} parent=1 // loop_exit
      _
    %486 = vsyncpa [#allocation3], 1
    %s487 = scalar_lea.sflag [#allocation3], 1
    %488 = vsyncpa %s487, 1

</llo_original>
